<compile_context>
chip_gen: v6e
topology: v6e:2x2x1
jax: 0.10.0
libtpu: 0.0.40
codegen_flags: <defaults>
</compile_context>

<pallas_src>
import jax
import jax.numpy as jnp
from jax.experimental import pallas as pl
from jax.experimental.pallas import tpu as pltpu


def generator_kernel(x_ref, w1_ref, b1_ref, w2_ref, b2_ref, o_ref):
    # First linear: (TB, z_dim)[bf16] @ (z_dim, 256)[bf16] -> f32 accum.
    h = jnp.dot(x_ref[...], w1_ref[...], preferred_element_type=jnp.float32)
    h = h + b1_ref[...]                       # bias in f32
    # LeakyReLU(0.01): one vmul + one vmax.
    h = jnp.maximum(h, 0.01 * h)
    # Second linear: (TB, 256)[bf16] @ (256, img_pad)[bf16] -> f32 accum.
    y = jnp.dot(h.astype(w2_ref.dtype), w2_ref[...],
                preferred_element_type=jnp.float32)
    y = y + b2_ref[...]
    # Tanh on the EUP, store lane-dense f32 output.
    o_ref[...] = jnp.tanh(y)


def generator_forward(x, w1, b1, w2, b2, *, batch_tile=256):
    """x: (B, z_dim) f32; w1: (z_dim, 256); b1: (1, 256);
    w2: (256, img_dim); b2: (1, img_dim). Returns (B, img_dim) f32."""
    B, Z = x.shape
    H = w1.shape[1]
    img_dim = w2.shape[1]

    # --- Lane-pad the output feature dim to a multiple of 128 (784 -> 896) ---
    img_pad = ((img_dim + 127) // 128) * 128
    if img_pad != img_dim:
        w2 = jnp.pad(w2, ((0, 0), (0, img_pad - img_dim)))
        b2 = jnp.pad(b2, ((0, 0), (0, img_pad - img_dim)))

    # --- Tile the batch axis (pad B up to a multiple of the tile) -----------
    b8 = ((B + 7) // 8) * 8
    tb = min(batch_tile, b8)                   # TB=256 default; tiny B -> one tile
    b_pad = ((B + tb - 1) // tb) * tb
    if b_pad != B:
        x = jnp.pad(x, ((0, b_pad - B), (0, 0)))

    # --- bf16 weights/activations; f32 biases + accumulation ----------------
    x16 = x.astype(jnp.bfloat16)
    w1_16 = w1.astype(jnp.bfloat16)
    w2_16 = w2.astype(jnp.bfloat16)
    b1_f32 = b1.astype(jnp.float32)
    b2_f32 = b2.astype(jnp.float32)

    cost = pl.CostEstimate(
        flops=2 * b_pad * (Z * H + H * img_pad),
        transcendentals=b_pad * img_pad,
        bytes_accessed=(x16.size * 2 + w1_16.size * 2 + w2_16.size * 2
                        + b1_f32.size * 4 + b2_f32.size * 4
                        + b_pad * img_pad * 4),
    )

    out = pl.pallas_call(
        generator_kernel,
        out_shape=jax.ShapeDtypeStruct((b_pad, img_pad), jnp.float32),
        grid=(b_pad // tb,),
        in_specs=[
            pl.BlockSpec((tb, Z), lambda i: (i, 0)),        # x tile, pipelined
            pl.BlockSpec((Z, H), lambda i: (0, 0)),         # w1 resident
            pl.BlockSpec((1, H), lambda i: (0, 0)),         # b1 resident
            pl.BlockSpec((H, img_pad), lambda i: (0, 0)),   # w2 resident
            pl.BlockSpec((1, img_pad), lambda i: (0, 0)),   # b2 resident
        ],
        out_specs=pl.BlockSpec((tb, img_pad), lambda i: (i, 0)),
        compiler_params=pltpu.CompilerParams(
            # Batch axis is independent -> shard across both TCs on v7x.
            dimension_semantics=("parallel",),
        ),
        cost_estimate=cost,
    )(x16, w1_16, b1_f32, w2_16, b2_f32)

    # Slice away batch / lane padding.
    return out[:B, :img_dim]


def init_params(key, z_dim, hidden, img_dim):
    """Deterministic init mimicking PyTorch nn.Linear default
    (uniform(-1/sqrt(fan_in), 1/sqrt(fan_in)))."""
    k1, k2, k3, k4 = jax.random.split(key, 4)
    bound1 = 1.0 / jnp.sqrt(z_dim)
    bound2 = 1.0 / jnp.sqrt(hidden)
    w1 = jax.random.uniform(k1, (z_dim, hidden), jnp.float32, -bound1, bound1)
    b1 = jax.random.uniform(k2, (1, hidden), jnp.float32, -bound1, bound1)
    w2 = jax.random.uniform(k3, (hidden, img_dim), jnp.float32, -bound2, bound2)
    b2 = jax.random.uniform(k4, (1, img_dim), jnp.float32, -bound2, bound2)
    return w1, b1, w2, b2


if __name__ == "__main__":
    key = jax.random.PRNGKey(0)
    B, Z_DIM, HIDDEN, IMG_DIM = 8, 64, 256, 784  # img_dim = 28*28 (MNIST-style)

    kx, kp = jax.random.split(key)
    x = jax.random.normal(kx, (B, Z_DIM), dtype=jnp.float32)
    w1, b1, w2, b2 = init_params(kp, Z_DIM, HIDDEN, IMG_DIM)

    out = generator_forward(x, w1, b1, w2, b2)
    out = jax.block_until_ready(out)

    # Pure-JAX f32 reference; kernel uses bf16 weights/activations, so use a
    # tolerance consistent with bf16 matmul inputs (tanh output is in [-1,1]).
    h_ref = x @ w1 + b1
    h_ref = jnp.where(h_ref > 0, h_ref, 0.01 * h_ref)
    ref = jnp.tanh(h_ref @ w2 + b2)
    assert out.shape == (B, IMG_DIM)
    assert float(jnp.max(jnp.abs(out - ref))) < 5e-2

    print("KERNEL_OK")
</pallas_src>

<mosaic_0001>
module attributes {stable_mosaic.version = 11 : i64} {
  func.func @generator_kernel(%arg0: i32, %arg1: memref<8x64xbf16, #tpu.memory_space<vmem>>, %arg2: memref<64x256xbf16, #tpu.memory_space<vmem>>, %arg3: memref<1x256xf32, #tpu.memory_space<vmem>>, %arg4: memref<256x896xbf16, #tpu.memory_space<vmem>>, %arg5: memref<1x896xf32, #tpu.memory_space<vmem>>, %arg6: memref<8x896xf32, #tpu.memory_space<vmem>>) attributes {dimension_semantics = [#tpu.dimension_semantics<parallel>], iteration_bounds = array<i64: 1>, scalar_prefetch = 0 : i64, scratch_operands = 0 : i64, tpu.core_type = #tpu.core_type<tc>, window_params = [{transform_indices = @transform_0, window_bounds = array<i64: 8, 64>}, {pipeline_mode = #tpu.pipeline_mode<synchronous>, transform_indices = @transform_1, window_bounds = array<i64: 64, 256>}, {pipeline_mode = #tpu.pipeline_mode<synchronous>, transform_indices = @transform_2, window_bounds = array<i64: 1, 256>}, {pipeline_mode = #tpu.pipeline_mode<synchronous>, transform_indices = @transform_3, window_bounds = array<i64: 256, 896>}, {pipeline_mode = #tpu.pipeline_mode<synchronous>, transform_indices = @transform_4, window_bounds = array<i64: 1, 896>}, {transform_indices = @transform_5, window_bounds = array<i64: 8, 896>}]} {
    %c0 = arith.constant 0 : index
    %c0_0 = arith.constant 0 : index
    %0 = vector.load %arg1[%c0, %c0_0] : memref<8x64xbf16, #tpu.memory_space<vmem>>, vector<8x64xbf16>
    %c0_1 = arith.constant 0 : index
    %c0_2 = arith.constant 0 : index
    %1 = vector.load %arg2[%c0_1, %c0_2] : memref<64x256xbf16, #tpu.memory_space<vmem>>, vector<64x256xbf16>
    %cst = arith.constant dense<0.000000e+00> : vector<8x256xf32>
    %2 = tpu.matmul %0, %1, %cst {dimension_numbers = #tpu.dot_dimension_numbers<[1], [0], [0], [1], [0, 0, 1, 1], [], []>} : vector<8x64xbf16>, vector<64x256xbf16>, vector<8x256xf32> -> vector<8x256xf32>
    %c0_3 = arith.constant 0 : index
    %c0_4 = arith.constant 0 : index
    %3 = vector.load %arg3[%c0_3, %c0_4] : memref<1x256xf32, #tpu.memory_space<vmem>>, vector<1x256xf32>
    %4 = vector.broadcast %3 : vector<1x256xf32> to vector<8x256xf32>
    %5 = arith.addf %2, %4 : vector<8x256xf32>
    %cst_5 = arith.constant 0.00999999977 : f32
    %6 = vector.broadcast %cst_5 : f32 to vector<8x256xf32>
    %7 = arith.mulf %6, %5 : vector<8x256xf32>
    %8 = arith.maximumf %5, %7 : vector<8x256xf32>
    %9 = arith.truncf %8 : vector<8x256xf32> to vector<8x256xbf16>
    %c0_6 = arith.constant 0 : index
    %c0_7 = arith.constant 0 : index
    %10 = vector.load %arg4[%c0_6, %c0_7] : memref<256x896xbf16, #tpu.memory_space<vmem>>, vector<256x896xbf16>
    %cst_8 = arith.constant dense<0.000000e+00> : vector<8x896xf32>
    %11 = tpu.matmul %9, %10, %cst_8 {dimension_numbers = #tpu.dot_dimension_numbers<[1], [0], [0], [1], [0, 0, 1, 1], [], []>} : vector<8x256xbf16>, vector<256x896xbf16>, vector<8x896xf32> -> vector<8x896xf32>
    %c0_9 = arith.constant 0 : index
    %c0_10 = arith.constant 0 : index
    %12 = vector.load %arg5[%c0_9, %c0_10] : memref<1x896xf32, #tpu.memory_space<vmem>>, vector<1x896xf32>
    %13 = vector.broadcast %12 : vector<1x896xf32> to vector<8x896xf32>
    %14 = arith.addf %11, %13 : vector<8x896xf32>
    %15 = math.tanh %14 : vector<8x896xf32>
    %c0_11 = arith.constant 0 : index
    %c0_12 = arith.constant 0 : index
    %16 = vector.load %arg6[%c0_11, %c0_12] : memref<8x896xf32, #tpu.memory_space<vmem>>, vector<8x896xf32>
    tpu.vector_store %arg6[%c0_11, %c0_12], %15 {strides = array<i32>} : memref<8x896xf32, #tpu.memory_space<vmem>>, vector<8x896xf32>,
    return
  }
  func.func @transform_0(%arg0: i32) -> (i32, i32) {
    %c0_i32 = arith.constant 0 : i32
    %c0_i32_0 = arith.constant 0 : i32
    return %arg0, %c0_i32 : i32, i32
  }
  func.func @transform_1(%arg0: i32) -> (i32, i32) {
    %c0_i32 = arith.constant 0 : i32
    %c0_i32_0 = arith.constant 0 : i32
    %c0_i32_1 = arith.constant 0 : i32
    return %c0_i32, %c0_i32_0 : i32, i32
  }
  func.func @transform_2(%arg0: i32) -> (i32, i32) {
    %c0_i32 = arith.constant 0 : i32
    %c0_i32_0 = arith.constant 0 : i32
    %c0_i32_1 = arith.constant 0 : i32
    return %c0_i32, %c0_i32_0 : i32, i32
  }
  func.func @transform_3(%arg0: i32) -> (i32, i32) {
    %c0_i32 = arith.constant 0 : i32
    %c0_i32_0 = arith.constant 0 : i32
    %c0_i32_1 = arith.constant 0 : i32
    return %c0_i32, %c0_i32_0 : i32, i32
  }
  func.func @transform_4(%arg0: i32) -> (i32, i32) {
    %c0_i32 = arith.constant 0 : i32
    %c0_i32_0 = arith.constant 0 : i32
    %c0_i32_1 = arith.constant 0 : i32
    return %c0_i32, %c0_i32_0 : i32, i32
  }
  func.func @transform_5(%arg0: i32) -> (i32, i32) {
    %c0_i32 = arith.constant 0 : i32
    %c0_i32_0 = arith.constant 0 : i32
    return %arg0, %c0_i32 : i32, i32
  }
}

</mosaic_0001>

<llo_original>
// kernel: tpu_custom_call.1
$region0: #{tpu_custom_call.1}
  #allocation0 [shape = 'u32[]', space=smem, size = 0x4, offset = 0x4, fixed_abs, tag = 'smem constant byte address 0x4 - core index']
  #allocation1 [shape = 'u32[144,128]{1,0:T(1,128)}', space=vmem, size = 0x12000, scoped, tag = 'internal scratch']
  %s0 = inlined_call_operand.hbm [shape: bf16[8,64], index: 0, kind: input, shape index: {}]
  %s1 = inlined_call_operand.hbm [shape: bf16[64,256], index: 1, kind: input, shape index: {}]
  %s2 = inlined_call_operand.hbm [shape: f32[1,256], index: 2, kind: input, shape index: {}]
  %s3 = inlined_call_operand.hbm [shape: bf16[256,896], index: 3, kind: input, shape index: {}]
  %s4 = inlined_call_operand.vmem [shape: f32[1,896], index: 4, kind: input, shape index: {}]
  %s5 = inlined_call_operand.hbm [shape: f32[8,896], index: 5, kind: output, shape index: {}]
  %s6 = sld [smem:[#allocation0]]
  $region46: #{tpu_custom_call.1} parent=0
    _
  %s8 = ssub.s32 1, %s6
  %s9 = scalar_select 0, %s8, %s6
  $region1: #{tpu_custom_call.1} parent=0
    #allocation2 [shape = 'u8[2048]{0}', space=vmem, size = 0x800, scoped, tag = 'input window, operand 0, single buffered']
    #allocation3 [shape = 's32[1]{0}', space=sflag, size = 0x4, scoped, tag = 'scoped memory for tpu_custom_call.1']
    #allocation4 [shape = 's32[1]{0}', space=sflag, size = 0x4, scoped, tag = 'scoped memory for tpu_custom_call.1']
    #allocation5 [shape = 'u8[32768]{0}', space=vmem, size = 0x8000, scoped, tag = 'input window, operand 1, single buffered']
    #allocation6 [shape = 's32[1]{0}', space=sflag, size = 0x4, scoped, tag = 'scoped memory for tpu_custom_call.1']
    #allocation7 [shape = 'u8[1024]{0}', space=vmem, size = 0x400, scoped, tag = 'input window, operand 2, single buffered']
    #allocation8 [shape = 'u8[458752]{0}', space=vmem, size = 0x70000, scoped, tag = 'input window, operand 3, single buffered']
    #allocation9 [shape = 's32[1]{0}', space=sflag, size = 0x4, scoped, tag = 'scoped memory for tpu_custom_call.1']
    #allocation10 [shape = 'u8[28672]{0}', space=vmem, size = 0x7000, scoped, tag = 'output window, operand 0, single buffered']
    %10 = vsyncpa [#allocation3], 0
    %11 = vsyncpa [#allocation6], 0
    %12 = vsyncpa [#allocation9], 0
    %13 = vsyncpa [#allocation4], 0
    // Predicated region
    $region2: #{tpu_custom_call.1} parent=1 // pred_check
      _
    $region3: #{tpu_custom_call.1} parent=1 // pred_check_branch
      %15 = sbr.rel (0) target = $region5
    $region4: #{tpu_custom_call.1} parent=1 // pred_region
      %s17 = ssub.s32 64, 64
      %18 = vsyncadd [#allocation3], %s17
      %s20 = sshll.u32 [#allocation2], 4
      %s21 = int_to_ptr.vmem [resolvable:$true] %s20
      %23 = dma.hbm_to_vmem [thread:$0]  %s0, 64, %s21, [#allocation3]
    $region5: #{tpu_custom_call.1} parent=1 // pred_fallthru
      _
    // Predicated region
    $region6: #{tpu_custom_call.1} parent=1 // pred_check
      _
    $region7: #{tpu_custom_call.1} parent=1 // pred_check_branch
      %25 = sbr.rel (0) target = $region9
    $region8: #{tpu_custom_call.1} parent=1 // pred_region
      %s27 = ssub.s32 1024, 1024
      %28 = vsyncadd [#allocation6], %s27
      %s29 = sshll.u32 [#allocation5], 4
      %s30 = int_to_ptr.vmem [resolvable:$true] %s29
      %35 = dma.hbm_to_vmem [thread:$0]  %s1, 1024, %s30, [#allocation6], 128, 128, 8
    $region9: #{tpu_custom_call.1} parent=1 // pred_fallthru
      _
    // Predicated region
    $region10: #{tpu_custom_call.1} parent=1 // pred_check
      _
    $region11: #{tpu_custom_call.1} parent=1 // pred_check_branch
      %37 = sbr.rel (0) target = $region13
    $region12: #{tpu_custom_call.1} parent=1 // pred_region
      %s39 = ssub.s32 32, 32
      %40 = vsyncadd [#allocation6], %s39
      %s42 = sshll.u32 [#allocation7], 4
      %s43 = int_to_ptr.vmem [resolvable:$true] %s42
      %45 = dma.hbm_to_vmem [thread:$0]  %s2, 32, %s43, [#allocation6]
    $region13: #{tpu_custom_call.1} parent=1 // pred_fallthru
      _
    // Predicated region
    $region14: #{tpu_custom_call.1} parent=1 // pred_check
      _
    $region15: #{tpu_custom_call.1} parent=1 // pred_check_branch
      %47 = sbr.rel (0) target = $region17
    $region16: #{tpu_custom_call.1} parent=1 // pred_region
      %s49 = ssub.s32 14336, 14336
      %50 = vsyncadd [#allocation9], %s49
      %s51 = sshll.u32 [#allocation8], 4
      %s52 = int_to_ptr.vmem [resolvable:$true] %s51
      %57 = dma.hbm_to_vmem [thread:$0]  %s3, 14336, %s52, [#allocation9], 448, 448, 28
    $region17: #{tpu_custom_call.1} parent=1 // pred_fallthru
      _
    // Predicated region
    $region18: #{tpu_custom_call.1} parent=1 // pred_check
      _
    $region19: #{tpu_custom_call.1} parent=1 // pred_check_branch
      %59 = sbr.rel (0) target = $region21
    $region20: #{tpu_custom_call.1} parent=1 // pred_region
      _
    $region21: #{tpu_custom_call.1} parent=1 // pred_fallthru
      _
    // Predicated region
    $region22: #{tpu_custom_call.1} parent=1 // pred_check
      _
    $region23: #{tpu_custom_call.1} parent=1 // pred_check_branch
      %61 = sbr.rel (0) target = $region25
    $region24: #{tpu_custom_call.1} parent=1 // pred_region
      %62 = dma.done [#allocation3], 64
    $region25: #{tpu_custom_call.1} parent=1 // pred_fallthru
      _
    // Predicated region
    $region26: #{tpu_custom_call.1} parent=1 // pred_check
      _
    $region27: #{tpu_custom_call.1} parent=1 // pred_check_branch
      %64 = sbr.rel (0) target = $region29
    $region28: #{tpu_custom_call.1} parent=1 // pred_region
      %65 = dma.done [#allocation6], 1024
    $region29: #{tpu_custom_call.1} parent=1 // pred_fallthru
      _
    // Predicated region
    $region30: #{tpu_custom_call.1} parent=1 // pred_check
      _
    $region31: #{tpu_custom_call.1} parent=1 // pred_check_branch
      %67 = sbr.rel (0) target = $region33
    $region32: #{tpu_custom_call.1} parent=1 // pred_region
      %68 = dma.done [#allocation6], 32
    $region33: #{tpu_custom_call.1} parent=1 // pred_fallthru
      _
    // Predicated region
    $region34: #{tpu_custom_call.1} parent=1 // pred_check
      _
    $region35: #{tpu_custom_call.1} parent=1 // pred_check_branch
      %70 = sbr.rel (0) target = $region37
    $region36: #{tpu_custom_call.1} parent=1 // pred_region
      %71 = dma.done [#allocation9], 14336
    $region37: #{tpu_custom_call.1} parent=1 // pred_fallthru
      _
    %v73 = vld [vmem:[#allocation2] sm:$0xf]
    %v74 = vld [vmem:[#allocation5] sm:$0xff]
    %v75 = vld [vmem:[#allocation5 + $0x8] sm:$0xff]
    %v76 = vld [vmem:[#allocation5 + $0x10] sm:$0xff]
    %v77 = vld [vmem:[#allocation5 + $0x18] sm:$0xff]
    %v78 = vld [vmem:[#allocation5 + $0x20] sm:$0xff]
    %v79 = vld [vmem:[#allocation5 + $0x28] sm:$0xff]
    %v80 = vld [vmem:[#allocation5 + $0x30] sm:$0xff]
    %v81 = vld [vmem:[#allocation5 + $0x38] sm:$0xff]
    %v82 = vld [vmem:[#allocation7] sm:$0x3]
    %v84 = vlaneseq
    %v85 = vshrl.u32 %v84, 7
    %v86 = vsub.s32 0, %v85
    %v87 = vrot.slane %v82, %v86
    %v88 = vlaneseq
    %v89 = vshrl.u32 %v88, 7
    %v90 = vsub.s32 1, %v89
    %v91 = vrot.slane %v82, %v90
    %v102 = vunpack.c.l.b16 %v74
    %v103 = vunpack.c.h.b16 %v74
    %v104 = vunpack.c.l.b16 %v75
    %v105 = vunpack.c.h.b16 %v75
    %v106 = vunpack.c.l.b16 %v76
    %v107 = vunpack.c.h.b16 %v76
    %v108 = vunpack.c.l.b16 %v77
    %v109 = vunpack.c.h.b16 %v77
    %v110 = vunpack.c.l.b16 %v78
    %v111 = vunpack.c.h.b16 %v78
    %v112 = vunpack.c.l.b16 %v79
    %v113 = vunpack.c.h.b16 %v79
    %v114 = vunpack.c.l.b16 %v80
    %v115 = vunpack.c.h.b16 %v80
    %v116 = vunpack.c.l.b16 %v81
    %v117 = vunpack.c.h.b16 %v81
    %v118 = vpack.c.b16 %v104, %v102
    %v119 = vpack.c.b16 %v105, %v103
    %v120 = vpack.c.b16 %v108, %v106
    %v121 = vpack.c.b16 %v109, %v107
    %v122 = vpack.c.b16 %v112, %v110
    %v123 = vpack.c.b16 %v113, %v111
    %v124 = vpack.c.b16 %v116, %v114
    %v125 = vpack.c.b16 %v117, %v115
    %vm134 = vcmask 523264
    %v136 = vsel %vm134, %v73, 0
    %138 = vmatprep.subr.bf16.mxu0 0
    %139 = vmatpush1.bf16.msra.mxu0 0
    %140 = vmatprep.subr.bf16.mxu0 0
    %141 = vmatpush1.bf16.msra.mxu0 0
    %142 = vmatprep.subr.bf16.mxu0 0
    %143 = vmatpush1.bf16.msra.mxu0 0
    %144 = vmatprep.subr.bf16.mxu0 0
    %145 = vmatpush1.bf16.msra.mxu0 0
    %146 = vmatprep.subr.bf16.mxu0 %v125
    %147 = vmatpush1.bf16.msra.mxu0 %v124
    %148 = vmatprep.subr.bf16.mxu0 %v123
    %149 = vmatpush1.bf16.msra.mxu0 %v122
    %150 = vmatprep.subr.bf16.mxu0 %v121
    %151 = vmatpush1.bf16.msra.mxu0 %v120
    %152 = vmatprep.subr.bf16.mxu0 %v119
    %153 = vmatpush1.bf16.msra.mxu0 %v118
    %154 = vmatprep.subr.bf16.mxu0 0
    %155 = vmatpush2.bf16.msra.mxu0 0
    %156 = vmatprep.subr.bf16.mxu0 0
    %157 = vmatpush2.bf16.msra.mxu0 0
    %158 = vmatprep.subr.bf16.mxu0 0
    %159 = vmatpush2.bf16.msra.mxu0 0
    %160 = vmatprep.subr.bf16.mxu0 0
    %161 = vmatpush2.bf16.msra.mxu0 0
    %162 = vmatprep.subr.bf16.mxu0 0
    %163 = vmatpush2.bf16.msra.mxu0 0
    %164 = vmatprep.subr.bf16.mxu0 0
    %165 = vmatpush2.bf16.msra.mxu0 0
    %166 = vmatprep.subr.bf16.mxu0 0
    %167 = vmatpush2.bf16.msra.mxu0 0
    %168 = vmatprep.subr.bf16.mxu0 0
    %169 = vmatpush2.bf16.msra.mxu0 0
    %170 = vmatprep.mubr.bf16.mxu0 0
    %171 = vmatmul.mubr.bf16.gmra.mxu0 %v136
    %v172 = vpop.f32.mrf.mxu0
    %v173 = vadd.f32 %v87, %v172
    %v174 = vpop.f32.mrf.mxu0
    %v175 = vadd.f32 %v91, %v174
    %v176 = vpop.f32.mrf.mxu0
    %v177 = vpop.f32.mrf.mxu0
    %178 = vdwg.mxu0
    %v179 = vmul.f32 %v173, 0.01
    %v180 = vmul.f32 %v175, 0.01
    %v181 = vmax.f32 %v173, %v179
    %v182 = vmax.f32 %v175, %v180
    %v183 = vpack.c.bf16 %v181, %v181
    %v184 = vpack.c.bf16 %v182, %v182
    %v185 = vld [vmem:[#allocation8] sm:$0xff]
    %v186 = vld [vmem:[#allocation8 + $0x8] sm:$0xff]
    %v187 = vld [vmem:[#allocation8 + $0x10] sm:$0xff]
    %v188 = vld [vmem:[#allocation8 + $0x18] sm:$0xf]
    %v189 = vld [vmem:[#allocation8 + $0x1c] sm:$0xff]
    %v190 = vld [vmem:[#allocation8 + $0x24] sm:$0xff]
    %v191 = vld [vmem:[#allocation8 + $0x2c] sm:$0xff]
    %v192 = vld [vmem:[#allocation8 + $0x34] sm:$0xf]
    %v193 = vld [vmem:[#allocation8 + $0x38] sm:$0xff]
    %v194 = vld [vmem:[#allocation8 + $0x40] sm:$0xff]
    %v195 = vld [vmem:[#allocation8 + $0x48] sm:$0xff]
    %v196 = vld [vmem:[#allocation8 + $0x50] sm:$0xf]
    %v197 = vld [vmem:[#allocation8 + $0x54] sm:$0xff]
    %v198 = vld [vmem:[#allocation8 + $0x5c] sm:$0xff]
    %v199 = vld [vmem:[#allocation8 + $0x64] sm:$0xff]
    %v200 = vld [vmem:[#allocation8 + $0x6c] sm:$0xf]
    %v201 = vld [vmem:[#allocation8 + $0x70] sm:$0xff]
    %v202 = vld [vmem:[#allocation8 + $0x78] sm:$0xff]
    %v203 = vld [vmem:[#allocation8 + $0x80] sm:$0xff]
    %v204 = vld [vmem:[#allocation8 + $0x88] sm:$0xf]
    %v205 = vld [vmem:[#allocation8 + $0x8c] sm:$0xff]
    %v206 = vld [vmem:[#allocation8 + $0x94] sm:$0xff]
    %v207 = vld [vmem:[#allocation8 + $0x9c] sm:$0xff]
    %v208 = vld [vmem:[#allocation8 + $0xa4] sm:$0xf]
    %v209 = vld [vmem:[#allocation8 + $0xa8] sm:$0xff]
    %v210 = vld [vmem:[#allocation8 + $0xb0] sm:$0xff]
    %v211 = vld [vmem:[#allocation8 + $0xb8] sm:$0xff]
    %v212 = vld [vmem:[#allocation8 + $0xc0] sm:$0xf]
    %v213 = vld [vmem:[#allocation8 + $0xc4] sm:$0xff]
    %v214 = vld [vmem:[#allocation8 + $0xcc] sm:$0xff]
    %v215 = vld [vmem:[#allocation8 + $0xd4] sm:$0xff]
    %v216 = vld [vmem:[#allocation8 + $0xdc] sm:$0xf]
    %v217 = vld [vmem:[#allocation8 + $0xe0] sm:$0xff]
    %v218 = vld [vmem:[#allocation8 + $0xe8] sm:$0xff]
    %v219 = vld [vmem:[#allocation8 + $0xf0] sm:$0xff]
    %v220 = vld [vmem:[#allocation8 + $0xf8] sm:$0xf]
    %v221 = vld [vmem:[#allocation8 + $0xfc] sm:$0xff]
    %v222 = vld [vmem:[#allocation8 + $0x104] sm:$0xff]
    %v223 = vld [vmem:[#allocation8 + $0x10c] sm:$0xff]
    %v224 = vld [vmem:[#allocation8 + $0x114] sm:$0xf]
    %v225 = vld [vmem:[#allocation8 + $0x118] sm:$0xff]
    %v226 = vld [vmem:[#allocation8 + $0x120] sm:$0xff]
    %v227 = vld [vmem:[#allocation8 + $0x128] sm:$0xff]
    %v228 = vld [vmem:[#allocation8 + $0x130] sm:$0xf]
    %v229 = vld [vmem:[#allocation8 + $0x134] sm:$0xff]
    %v230 = vld [vmem:[#allocation8 + $0x13c] sm:$0xff]
    %v231 = vld [vmem:[#allocation8 + $0x144] sm:$0xff]
    %v232 = vld [vmem:[#allocation8 + $0x14c] sm:$0xf]
    %v233 = vld [vmem:[#allocation8 + $0x150] sm:$0xff]
    %v234 = vld [vmem:[#allocation8 + $0x158] sm:$0xff]
    %v235 = vld [vmem:[#allocation8 + $0x160] sm:$0xff]
    %v236 = vld [vmem:[#allocation8 + $0x168] sm:$0xf]
    %v237 = vld [vmem:[#allocation8 + $0x16c] sm:$0xff]
    %v238 = vld [vmem:[#allocation8 + $0x174] sm:$0xff]
    %v239 = vld [vmem:[#allocation8 + $0x17c] sm:$0xff]
    %v240 = vld [vmem:[#allocation8 + $0x184] sm:$0xf]
    %v241 = vld [vmem:[#allocation8 + $0x188] sm:$0xff]
    %v242 = vld [vmem:[#allocation8 + $0x190] sm:$0xff]
    %v243 = vld [vmem:[#allocation8 + $0x198] sm:$0xff]
    %v244 = vld [vmem:[#allocation8 + $0x1a0] sm:$0xf]
    %v245 = vld [vmem:[#allocation8 + $0x1a4] sm:$0xff]
    %v246 = vld [vmem:[#allocation8 + $0x1ac] sm:$0xff]
    %v247 = vld [vmem:[#allocation8 + $0x1b4] sm:$0xff]
    %v248 = vld [vmem:[#allocation8 + $0x1bc] sm:$0xf]
    %v249 = vld [vmem:[#allocation8 + $0x1c0] sm:$0xff]
    %v250 = vld [vmem:[#allocation8 + $0x1c8] sm:$0xff]
    %v251 = vld [vmem:[#allocation8 + $0x1d0] sm:$0xff]
    %v252 = vld [vmem:[#allocation8 + $0x1d8] sm:$0xf]
    %v253 = vld [vmem:[#allocation8 + $0x1dc] sm:$0xff]
    %v254 = vld [vmem:[#allocation8 + $0x1e4] sm:$0xff]
    %v255 = vld [vmem:[#allocation8 + $0x1ec] sm:$0xff]
    %v256 = vld [vmem:[#allocation8 + $0x1f4] sm:$0xf]
    %v257 = vld [vmem:[#allocation8 + $0x1f8] sm:$0xff]
    %v258 = vld [vmem:[#allocation8 + $0x200] sm:$0xff]
    %v259 = vld [vmem:[#allocation8 + $0x208] sm:$0xff]
    %v260 = vld [vmem:[#allocation8 + $0x210] sm:$0xf]
    %v261 = vld [vmem:[#allocation8 + $0x214] sm:$0xff]
    %v262 = vld [vmem:[#allocation8 + $0x21c] sm:$0xff]
    %v263 = vld [vmem:[#allocation8 + $0x224] sm:$0xff]
    %v264 = vld [vmem:[#allocation8 + $0x22c] sm:$0xf]
    %v265 = vld [vmem:[#allocation8 + $0x230] sm:$0xff]
    %v266 = vld [vmem:[#allocation8 + $0x238] sm:$0xff]
    %v267 = vld [vmem:[#allocation8 + $0x240] sm:$0xff]
    %v268 = vld [vmem:[#allocation8 + $0x248] sm:$0xf]
    %v269 = vld [vmem:[#allocation8 + $0x24c] sm:$0xff]
    %v270 = vld [vmem:[#allocation8 + $0x254] sm:$0xff]
    %v271 = vld [vmem:[#allocation8 + $0x25c] sm:$0xff]
    %v272 = vld [vmem:[#allocation8 + $0x264] sm:$0xf]
    %v273 = vld [vmem:[#allocation8 + $0x268] sm:$0xff]
    %v274 = vld [vmem:[#allocation8 + $0x270] sm:$0xff]
    %v275 = vld [vmem:[#allocation8 + $0x278] sm:$0xff]
    %v276 = vld [vmem:[#allocation8 + $0x280] sm:$0xf]
    %v277 = vld [vmem:[#allocation8 + $0x284] sm:$0xff]
    %v278 = vld [vmem:[#allocation8 + $0x28c] sm:$0xff]
    %v279 = vld [vmem:[#allocation8 + $0x294] sm:$0xff]
    %v280 = vld [vmem:[#allocation8 + $0x29c] sm:$0xf]
    %v281 = vld [vmem:[#allocation8 + $0x2a0] sm:$0xff]
    %v282 = vld [vmem:[#allocation8 + $0x2a8] sm:$0xff]
    %v283 = vld [vmem:[#allocation8 + $0x2b0] sm:$0xff]
    %v284 = vld [vmem:[#allocation8 + $0x2b8] sm:$0xf]
    %v285 = vld [vmem:[#allocation8 + $0x2bc] sm:$0xff]
    %v286 = vld [vmem:[#allocation8 + $0x2c4] sm:$0xff]
    %v287 = vld [vmem:[#allocation8 + $0x2cc] sm:$0xff]
    %v288 = vld [vmem:[#allocation8 + $0x2d4] sm:$0xf]
    %v289 = vld [vmem:[#allocation8 + $0x2d8] sm:$0xff]
    %v290 = vld [vmem:[#allocation8 + $0x2e0] sm:$0xff]
    %v291 = vld [vmem:[#allocation8 + $0x2e8] sm:$0xff]
    %v292 = vld [vmem:[#allocation8 + $0x2f0] sm:$0xf]
    %v293 = vld [vmem:[#allocation8 + $0x2f4] sm:$0xff]
    %v294 = vld [vmem:[#allocation8 + $0x2fc] sm:$0xff]
    %v295 = vld [vmem:[#allocation8 + $0x304] sm:$0xff]
    %v296 = vld [vmem:[#allocation8 + $0x30c] sm:$0xf]
    %v297 = vld [vmem:[#allocation8 + $0x310] sm:$0xff]
    %v298 = vld [vmem:[#allocation8 + $0x318] sm:$0xff]
    %v299 = vld [vmem:[#allocation8 + $0x320] sm:$0xff]
    %v300 = vld [vmem:[#allocation8 + $0x328] sm:$0xf]
    %v301 = vld [vmem:[#allocation8 + $0x32c] sm:$0xff]
    %v302 = vld [vmem:[#allocation8 + $0x334] sm:$0xff]
    %v303 = vld [vmem:[#allocation8 + $0x33c] sm:$0xff]
    %v304 = vld [vmem:[#allocation8 + $0x344] sm:$0xf]
    %v305 = vld [vmem:[#allocation8 + $0x348] sm:$0xff]
    %v306 = vld [vmem:[#allocation8 + $0x350] sm:$0xff]
    %v307 = vld [vmem:[#allocation8 + $0x358] sm:$0xff]
    %v308 = vld [vmem:[#allocation8 + $0x360] sm:$0xf]
    %v309 = vld [vmem:[#allocation8 + $0x364] sm:$0xff]
    %v310 = vld [vmem:[#allocation8 + $0x36c] sm:$0xff]
    %v311 = vld [vmem:[#allocation8 + $0x374] sm:$0xff]
    %v312 = vld [vmem:[#allocation8 + $0x37c] sm:$0xf]
    %v313 = vld [vmem:[%s4] sm:$0xff]
    %v315 = vlaneseq
    %v316 = vshrl.u32 %v315, 7
    %v317 = vsub.s32 0, %v316
    %v318 = vrot.slane %v313, %v317
    %v319 = vlaneseq
    %v320 = vshrl.u32 %v319, 7
    %v321 = vsub.s32 1, %v320
    %v322 = vrot.slane %v313, %v321
    %v323 = vlaneseq
    %v324 = vshrl.u32 %v323, 7
    %v325 = vsub.s32 2, %v324
    %v326 = vrot.slane %v313, %v325
    %v327 = vlaneseq
    %v328 = vshrl.u32 %v327, 7
    %v329 = vsub.s32 3, %v328
    %v330 = vrot.slane %v313, %v329
    %v331 = vlaneseq
    %v332 = vshrl.u32 %v331, 7
    %v333 = vsub.s32 4, %v332
    %v334 = vrot.slane %v313, %v333
    %v335 = vlaneseq
    %v336 = vshrl.u32 %v335, 7
    %v337 = vsub.s32 5, %v336
    %v338 = vrot.slane %v313, %v337
    %v339 = vlaneseq
    %v340 = vshrl.u32 %v339, 7
    %v341 = vsub.s32 6, %v340
    %v342 = vrot.slane %v313, %v341
    %v478 = vunpack.c.l.b16 %v185
    %v479 = vunpack.c.h.b16 %v185
    %v480 = vunpack.c.l.b16 %v186
    %v481 = vunpack.c.h.b16 %v186
    %v482 = vunpack.c.l.b16 %v187
    %v483 = vunpack.c.h.b16 %v187
    %v484 = vunpack.c.l.b16 %v188
    %v485 = vunpack.c.l.b16 %v189
    %v486 = vunpack.c.h.b16 %v189
    %v487 = vunpack.c.l.b16 %v190
    %v488 = vunpack.c.h.b16 %v190
    %v489 = vunpack.c.l.b16 %v191
    %v490 = vunpack.c.h.b16 %v191
    %v491 = vunpack.c.l.b16 %v192
    %v492 = vunpack.c.l.b16 %v193
    %v493 = vunpack.c.h.b16 %v193
    %v494 = vunpack.c.l.b16 %v194
    %v495 = vunpack.c.h.b16 %v194
    %v496 = vunpack.c.l.b16 %v195
    %v497 = vunpack.c.h.b16 %v195
    %v498 = vunpack.c.l.b16 %v196
    %v499 = vunpack.c.l.b16 %v197
    %v500 = vunpack.c.h.b16 %v197
    %v501 = vunpack.c.l.b16 %v198
    %v502 = vunpack.c.h.b16 %v198
    %v503 = vunpack.c.l.b16 %v199
    %v504 = vunpack.c.h.b16 %v199
    %v505 = vunpack.c.l.b16 %v200
    %v506 = vunpack.c.l.b16 %v201
    %v507 = vunpack.c.h.b16 %v201
    %v508 = vunpack.c.l.b16 %v202
    %v509 = vunpack.c.h.b16 %v202
    %v510 = vunpack.c.l.b16 %v203
    %v511 = vunpack.c.h.b16 %v203
    %v512 = vunpack.c.l.b16 %v204
    %v513 = vunpack.c.l.b16 %v205
    %v514 = vunpack.c.h.b16 %v205
    %v515 = vunpack.c.l.b16 %v206
    %v516 = vunpack.c.h.b16 %v206
    %v517 = vunpack.c.l.b16 %v207
    %v518 = vunpack.c.h.b16 %v207
    %v519 = vunpack.c.l.b16 %v208
    %v520 = vunpack.c.l.b16 %v209
    %v521 = vunpack.c.h.b16 %v209
    %v522 = vunpack.c.l.b16 %v210
    %v523 = vunpack.c.h.b16 %v210
    %v524 = vunpack.c.l.b16 %v211
    %v525 = vunpack.c.h.b16 %v211
    %v526 = vunpack.c.l.b16 %v212
    %v527 = vunpack.c.l.b16 %v213
    %v528 = vunpack.c.h.b16 %v213
    %v529 = vunpack.c.l.b16 %v214
    %v530 = vunpack.c.h.b16 %v214
    %v531 = vunpack.c.l.b16 %v215
    %v532 = vunpack.c.h.b16 %v215
    %v533 = vunpack.c.l.b16 %v216
    %v534 = vunpack.c.l.b16 %v217
    %v535 = vunpack.c.h.b16 %v217
    %v536 = vunpack.c.l.b16 %v218
    %v537 = vunpack.c.h.b16 %v218
    %v538 = vunpack.c.l.b16 %v219
    %v539 = vunpack.c.h.b16 %v219
    %v540 = vunpack.c.l.b16 %v220
    %v541 = vunpack.c.l.b16 %v221
    %v542 = vunpack.c.h.b16 %v221
    %v543 = vunpack.c.l.b16 %v222
    %v544 = vunpack.c.h.b16 %v222
    %v545 = vunpack.c.l.b16 %v223
    %v546 = vunpack.c.h.b16 %v223
    %v547 = vunpack.c.l.b16 %v224
    %v548 = vunpack.c.l.b16 %v225
    %v549 = vunpack.c.h.b16 %v225
    %v550 = vunpack.c.l.b16 %v226
    %v551 = vunpack.c.h.b16 %v226
    %v552 = vunpack.c.l.b16 %v227
    %v553 = vunpack.c.h.b16 %v227
    %v554 = vunpack.c.l.b16 %v228
    %v555 = vunpack.c.l.b16 %v229
    %v556 = vunpack.c.h.b16 %v229
    %v557 = vunpack.c.l.b16 %v230
    %v558 = vunpack.c.h.b16 %v230
    %v559 = vunpack.c.l.b16 %v231
    %v560 = vunpack.c.h.b16 %v231
    %v561 = vunpack.c.l.b16 %v232
    %v562 = vunpack.c.l.b16 %v233
    %v563 = vunpack.c.h.b16 %v233
    %v564 = vunpack.c.l.b16 %v234
    %v565 = vunpack.c.h.b16 %v234
    %v566 = vunpack.c.l.b16 %v235
    %v567 = vunpack.c.h.b16 %v235
    %v568 = vunpack.c.l.b16 %v236
    %v569 = vunpack.c.l.b16 %v237
    %v570 = vunpack.c.h.b16 %v237
    %v571 = vunpack.c.l.b16 %v238
    %v572 = vunpack.c.h.b16 %v238
    %v573 = vunpack.c.l.b16 %v239
    %v574 = vunpack.c.h.b16 %v239
    %v575 = vunpack.c.l.b16 %v240
    %v576 = vunpack.c.l.b16 %v241
    %v577 = vunpack.c.h.b16 %v241
    %v578 = vunpack.c.l.b16 %v242
    %v579 = vunpack.c.h.b16 %v242
    %v580 = vunpack.c.l.b16 %v243
    %v581 = vunpack.c.h.b16 %v243
    %v582 = vunpack.c.l.b16 %v244
    %v583 = vunpack.c.l.b16 %v245
    %v584 = vunpack.c.h.b16 %v245
    %v585 = vunpack.c.l.b16 %v246
    %v586 = vunpack.c.h.b16 %v246
    %v587 = vunpack.c.l.b16 %v247
    %v588 = vunpack.c.h.b16 %v247
    %v589 = vunpack.c.l.b16 %v248
    %v590 = vunpack.c.l.b16 %v249
    %v591 = vunpack.c.h.b16 %v249
    %v592 = vunpack.c.l.b16 %v250
    %v593 = vunpack.c.h.b16 %v250
    %v594 = vunpack.c.l.b16 %v251
    %v595 = vunpack.c.h.b16 %v251
    %v596 = vunpack.c.l.b16 %v252
    %v597 = vunpack.c.l.b16 %v253
    %v598 = vunpack.c.h.b16 %v253
    %v599 = vunpack.c.l.b16 %v254
    %v600 = vunpack.c.h.b16 %v254
    %v601 = vunpack.c.l.b16 %v255
    %v602 = vunpack.c.h.b16 %v255
    %v603 = vunpack.c.l.b16 %v256
    %v604 = vunpack.c.l.b16 %v257
    %v605 = vunpack.c.h.b16 %v257
    %v606 = vunpack.c.l.b16 %v258
    %v607 = vunpack.c.h.b16 %v258
    %v608 = vunpack.c.l.b16 %v259
    %v609 = vunpack.c.h.b16 %v259
    %v610 = vunpack.c.l.b16 %v260
    %v611 = vunpack.c.l.b16 %v261
    %v612 = vunpack.c.h.b16 %v261
    %v613 = vunpack.c.l.b16 %v262
    %v614 = vunpack.c.h.b16 %v262
    %v615 = vunpack.c.l.b16 %v263
    %v616 = vunpack.c.h.b16 %v263
    %v617 = vunpack.c.l.b16 %v264
    %v618 = vunpack.c.l.b16 %v265
    %v619 = vunpack.c.h.b16 %v265
    %v620 = vunpack.c.l.b16 %v266
    %v621 = vunpack.c.h.b16 %v266
    %v622 = vunpack.c.l.b16 %v267
    %v623 = vunpack.c.h.b16 %v267
    %v624 = vunpack.c.l.b16 %v268
    %v625 = vunpack.c.l.b16 %v269
    %v626 = vunpack.c.h.b16 %v269
    %v627 = vunpack.c.l.b16 %v270
    %v628 = vunpack.c.h.b16 %v270
    %v629 = vunpack.c.l.b16 %v271
    %v630 = vunpack.c.h.b16 %v271
    %v631 = vunpack.c.l.b16 %v272
    %v632 = vunpack.c.l.b16 %v273
    %v633 = vunpack.c.h.b16 %v273
    %v634 = vunpack.c.l.b16 %v274
    %v635 = vunpack.c.h.b16 %v274
    %v636 = vunpack.c.l.b16 %v275
    %v637 = vunpack.c.h.b16 %v275
    %v638 = vunpack.c.l.b16 %v276
    %v639 = vunpack.c.l.b16 %v277
    %v640 = vunpack.c.h.b16 %v277
    %v641 = vunpack.c.l.b16 %v278
    %v642 = vunpack.c.h.b16 %v278
    %v643 = vunpack.c.l.b16 %v279
    %v644 = vunpack.c.h.b16 %v279
    %v645 = vunpack.c.l.b16 %v280
    %v646 = vunpack.c.l.b16 %v281
    %v647 = vunpack.c.h.b16 %v281
    %v648 = vunpack.c.l.b16 %v282
    %v649 = vunpack.c.h.b16 %v282
    %v650 = vunpack.c.l.b16 %v283
    %v651 = vunpack.c.h.b16 %v283
    %v652 = vunpack.c.l.b16 %v284
    %v653 = vunpack.c.l.b16 %v285
    %v654 = vunpack.c.h.b16 %v285
    %v655 = vunpack.c.l.b16 %v286
    %v656 = vunpack.c.h.b16 %v286
    %v657 = vunpack.c.l.b16 %v287
    %v658 = vunpack.c.h.b16 %v287
    %v659 = vunpack.c.l.b16 %v288
    %v660 = vunpack.c.l.b16 %v289
    %v661 = vunpack.c.h.b16 %v289
    %v662 = vunpack.c.l.b16 %v290
    %v663 = vunpack.c.h.b16 %v290
    %v664 = vunpack.c.l.b16 %v291
    %v665 = vunpack.c.h.b16 %v291
    %v666 = vunpack.c.l.b16 %v292
    %v667 = vunpack.c.l.b16 %v293
    %v668 = vunpack.c.h.b16 %v293
    %v669 = vunpack.c.l.b16 %v294
    %v670 = vunpack.c.h.b16 %v294
    %v671 = vunpack.c.l.b16 %v295
    %v672 = vunpack.c.h.b16 %v295
    %v673 = vunpack.c.l.b16 %v296
    %v674 = vunpack.c.l.b16 %v297
    %v675 = vunpack.c.h.b16 %v297
    %v676 = vunpack.c.l.b16 %v298
    %v677 = vunpack.c.h.b16 %v298
    %v678 = vunpack.c.l.b16 %v299
    %v679 = vunpack.c.h.b16 %v299
    %v680 = vunpack.c.l.b16 %v300
    %v681 = vunpack.c.l.b16 %v301
    %v682 = vunpack.c.h.b16 %v301
    %v683 = vunpack.c.l.b16 %v302
    %v684 = vunpack.c.h.b16 %v302
    %v685 = vunpack.c.l.b16 %v303
    %v686 = vunpack.c.h.b16 %v303
    %v687 = vunpack.c.l.b16 %v304
    %v688 = vunpack.c.l.b16 %v305
    %v689 = vunpack.c.h.b16 %v305
    %v690 = vunpack.c.l.b16 %v306
    %v691 = vunpack.c.h.b16 %v306
    %v692 = vunpack.c.l.b16 %v307
    %v693 = vunpack.c.h.b16 %v307
    %v694 = vunpack.c.l.b16 %v308
    %v695 = vunpack.c.l.b16 %v309
    %v696 = vunpack.c.h.b16 %v309
    %v697 = vunpack.c.l.b16 %v310
    %v698 = vunpack.c.h.b16 %v310
    %v699 = vunpack.c.l.b16 %v311
    %v700 = vunpack.c.h.b16 %v311
    %v701 = vunpack.c.l.b16 %v312
    %v702 = vpack.c.b16 %v485, %v478
    %v703 = vpack.c.b16 %v486, %v479
    %v704 = vpack.c.b16 %v487, %v480
    %v705 = vpack.c.b16 %v488, %v481
    %v706 = vpack.c.b16 %v489, %v482
    %v707 = vpack.c.b16 %v490, %v483
    %v708 = vpack.c.b16 %v491, %v484
    %v709 = vpack.c.b16 %v499, %v492
    %v710 = vpack.c.b16 %v500, %v493
    %v711 = vpack.c.b16 %v501, %v494
    %v712 = vpack.c.b16 %v502, %v495
    %v713 = vpack.c.b16 %v503, %v496
    %v714 = vpack.c.b16 %v504, %v497
    %v715 = vpack.c.b16 %v505, %v498
    %v716 = vpack.c.b16 %v513, %v506
    %v717 = vpack.c.b16 %v514, %v507
    %v718 = vpack.c.b16 %v515, %v508
    %v719 = vpack.c.b16 %v516, %v509
    %v720 = vpack.c.b16 %v517, %v510
    %v721 = vpack.c.b16 %v518, %v511
    %v722 = vpack.c.b16 %v519, %v512
    %v723 = vpack.c.b16 %v527, %v520
    %v724 = vpack.c.b16 %v528, %v521
    %v725 = vpack.c.b16 %v529, %v522
    %v726 = vpack.c.b16 %v530, %v523
    %v727 = vpack.c.b16 %v531, %v524
    %v728 = vpack.c.b16 %v532, %v525
    %v729 = vpack.c.b16 %v533, %v526
    %v730 = vpack.c.b16 %v541, %v534
    %v731 = vpack.c.b16 %v542, %v535
    %v732 = vpack.c.b16 %v543, %v536
    %v733 = vpack.c.b16 %v544, %v537
    %v734 = vpack.c.b16 %v545, %v538
    %v735 = vpack.c.b16 %v546, %v539
    %v736 = vpack.c.b16 %v547, %v540
    %v737 = vpack.c.b16 %v555, %v548
    %v738 = vpack.c.b16 %v556, %v549
    %v739 = vpack.c.b16 %v557, %v550
    %v740 = vpack.c.b16 %v558, %v551
    %v741 = vpack.c.b16 %v559, %v552
    %v742 = vpack.c.b16 %v560, %v553
    %v743 = vpack.c.b16 %v561, %v554
    %v744 = vpack.c.b16 %v569, %v562
    %v745 = vpack.c.b16 %v570, %v563
    %v746 = vpack.c.b16 %v571, %v564
    %v747 = vpack.c.b16 %v572, %v565
    %v748 = vpack.c.b16 %v573, %v566
    %v749 = vpack.c.b16 %v574, %v567
    %v750 = vpack.c.b16 %v575, %v568
    %v751 = vpack.c.b16 %v583, %v576
    %v752 = vpack.c.b16 %v584, %v577
    %v753 = vpack.c.b16 %v585, %v578
    %v754 = vpack.c.b16 %v586, %v579
    %v755 = vpack.c.b16 %v587, %v580
    %v756 = vpack.c.b16 %v588, %v581
    %v757 = vpack.c.b16 %v589, %v582
    %v758 = vpack.c.b16 %v597, %v590
    %v759 = vpack.c.b16 %v598, %v591
    %v760 = vpack.c.b16 %v599, %v592
    %v761 = vpack.c.b16 %v600, %v593
    %v762 = vpack.c.b16 %v601, %v594
    %v763 = vpack.c.b16 %v602, %v595
    %v764 = vpack.c.b16 %v603, %v596
    %v765 = vpack.c.b16 %v611, %v604
    %v766 = vpack.c.b16 %v612, %v605
    %v767 = vpack.c.b16 %v613, %v606
    %v768 = vpack.c.b16 %v614, %v607
    %v769 = vpack.c.b16 %v615, %v608
    %v770 = vpack.c.b16 %v616, %v609
    %v771 = vpack.c.b16 %v617, %v610
    %v772 = vpack.c.b16 %v625, %v618
    %v773 = vpack.c.b16 %v626, %v619
    %v774 = vpack.c.b16 %v627, %v620
    %v775 = vpack.c.b16 %v628, %v621
    %v776 = vpack.c.b16 %v629, %v622
    %v777 = vpack.c.b16 %v630, %v623
    %v778 = vpack.c.b16 %v631, %v624
    %v779 = vpack.c.b16 %v639, %v632
    %v780 = vpack.c.b16 %v640, %v633
    %v781 = vpack.c.b16 %v641, %v634
    %v782 = vpack.c.b16 %v642, %v635
    %v783 = vpack.c.b16 %v643, %v636
    %v784 = vpack.c.b16 %v644, %v637
    %v785 = vpack.c.b16 %v645, %v638
    %v786 = vpack.c.b16 %v653, %v646
    %v787 = vpack.c.b16 %v654, %v647
    %v788 = vpack.c.b16 %v655, %v648
    %v789 = vpack.c.b16 %v656, %v649
    %v790 = vpack.c.b16 %v657, %v650
    %v791 = vpack.c.b16 %v658, %v651
    %v792 = vpack.c.b16 %v659, %v652
    %v793 = vpack.c.b16 %v667, %v660
    %v794 = vpack.c.b16 %v668, %v661
    %v795 = vpack.c.b16 %v669, %v662
    %v796 = vpack.c.b16 %v670, %v663
    %v797 = vpack.c.b16 %v671, %v664
    %v798 = vpack.c.b16 %v672, %v665
    %v799 = vpack.c.b16 %v673, %v666
    %v800 = vpack.c.b16 %v681, %v674
    %v801 = vpack.c.b16 %v682, %v675
    %v802 = vpack.c.b16 %v683, %v676
    %v803 = vpack.c.b16 %v684, %v677
    %v804 = vpack.c.b16 %v685, %v678
    %v805 = vpack.c.b16 %v686, %v679
    %v806 = vpack.c.b16 %v687, %v680
    %v807 = vpack.c.b16 %v695, %v688
    %v808 = vpack.c.b16 %v696, %v689
    %v809 = vpack.c.b16 %v697, %v690
    %v810 = vpack.c.b16 %v698, %v691
    %v811 = vpack.c.b16 %v699, %v692
    %v812 = vpack.c.b16 %v700, %v693
    %v813 = vpack.c.b16 %v701, %v694
    %926 = vmatprep.subr.bf16.mxu0 %v752
    %927 = vmatpush1.bf16.msra.mxu0 %v751
    %928 = vmatprep.subr.bf16.mxu0 %v745
    %929 = vmatpush1.bf16.msra.mxu0 %v744
    %930 = vmatprep.subr.bf16.mxu0 %v738
    %931 = vmatpush1.bf16.msra.mxu0 %v737
    %932 = vmatprep.subr.bf16.mxu0 %v731
    %933 = vmatpush1.bf16.msra.mxu0 %v730
    %934 = vmatprep.subr.bf16.mxu0 %v724
    %935 = vmatpush1.bf16.msra.mxu0 %v723
    %936 = vmatprep.subr.bf16.mxu0 %v717
    %937 = vmatpush1.bf16.msra.mxu0 %v716
    %938 = vmatprep.subr.bf16.mxu0 %v710
    %939 = vmatpush1.bf16.msra.mxu0 %v709
    %940 = vmatprep.subr.bf16.mxu0 %v703
    %941 = vmatpush1.bf16.msra.mxu0 %v702
    %942 = vmatprep.subr.bf16.mxu0 %v808
    %943 = vmatpush2.bf16.msra.mxu0 %v807
    %944 = vmatprep.subr.bf16.mxu0 %v801
    %945 = vmatpush2.bf16.msra.mxu0 %v800
    %946 = vmatprep.subr.bf16.mxu0 %v794
    %947 = vmatpush2.bf16.msra.mxu0 %v793
    %948 = vmatprep.subr.bf16.mxu0 %v787
    %949 = vmatpush2.bf16.msra.mxu0 %v786
    %950 = vmatprep.subr.bf16.mxu0 %v780
    %951 = vmatpush2.bf16.msra.mxu0 %v779
    %952 = vmatprep.subr.bf16.mxu0 %v773
    %953 = vmatpush2.bf16.msra.mxu0 %v772
    %954 = vmatprep.subr.bf16.mxu0 %v766
    %955 = vmatpush2.bf16.msra.mxu0 %v765
    %956 = vmatprep.subr.bf16.mxu0 %v759
    %957 = vmatpush2.bf16.msra.mxu0 %v758
    %958 = vmatprep.mubr.bf16.mxu0 %v184
    %959 = vmatmul.mubr.bf16.gmra.mxu0 %v183
    %v960 = vpop.f32.mrf.mxu0
    %v961 = vadd.f32 %v318, %v960
    %v962 = vpop.f32.mrf.mxu0
    %v963 = vadd.f32 %v322, %v962
    %v964 = vpop.f32.mrf.mxu0
    %v965 = vpop.f32.mrf.mxu0
    %966 = vdwg.mxu0
    %967 = vmatprep.subr.bf16.mxu0 %v754
    %968 = vmatpush1.bf16.msra.mxu0 %v753
    %969 = vmatprep.subr.bf16.mxu0 %v747
    %970 = vmatpush1.bf16.msra.mxu0 %v746
    %971 = vmatprep.subr.bf16.mxu0 %v740
    %972 = vmatpush1.bf16.msra.mxu0 %v739
    %973 = vmatprep.subr.bf16.mxu0 %v733
    %974 = vmatpush1.bf16.msra.mxu0 %v732
    %975 = vmatprep.subr.bf16.mxu0 %v726
    %976 = vmatpush1.bf16.msra.mxu0 %v725
    %977 = vmatprep.subr.bf16.mxu0 %v719
    %978 = vmatpush1.bf16.msra.mxu0 %v718
    %979 = vmatprep.subr.bf16.mxu0 %v712
    %980 = vmatpush1.bf16.msra.mxu0 %v711
    %981 = vmatprep.subr.bf16.mxu0 %v705
    %982 = vmatpush1.bf16.msra.mxu0 %v704
    %983 = vmatprep.subr.bf16.mxu0 %v810
    %984 = vmatpush2.bf16.msra.mxu0 %v809
    %985 = vmatprep.subr.bf16.mxu0 %v803
    %986 = vmatpush2.bf16.msra.mxu0 %v802
    %987 = vmatprep.subr.bf16.mxu0 %v796
    %988 = vmatpush2.bf16.msra.mxu0 %v795
    %989 = vmatprep.subr.bf16.mxu0 %v789
    %990 = vmatpush2.bf16.msra.mxu0 %v788
    %991 = vmatprep.subr.bf16.mxu0 %v782
    %992 = vmatpush2.bf16.msra.mxu0 %v781
    %993 = vmatprep.subr.bf16.mxu0 %v775
    %994 = vmatpush2.bf16.msra.mxu0 %v774
    %995 = vmatprep.subr.bf16.mxu0 %v768
    %996 = vmatpush2.bf16.msra.mxu0 %v767
    %997 = vmatprep.subr.bf16.mxu0 %v761
    %998 = vmatpush2.bf16.msra.mxu0 %v760
    %999 = vmatprep.mubr.bf16.mxu0 %v184
    %1000 = vmatmul.mubr.bf16.gmra.mxu0 %v183
    %v1001 = vpop.f32.mrf.mxu0
    %v1002 = vadd.f32 %v326, %v1001
    %v1003 = vpop.f32.mrf.mxu0
    %v1004 = vadd.f32 %v330, %v1003
    %v1005 = vpop.f32.mrf.mxu0
    %v1006 = vpop.f32.mrf.mxu0
    %1007 = vdwg.mxu0
    %1008 = vmatprep.subr.bf16.mxu0 %v756
    %1009 = vmatpush1.bf16.msra.mxu0 %v755
    %1010 = vmatprep.subr.bf16.mxu0 %v749
    %1011 = vmatpush1.bf16.msra.mxu0 %v748
    %1012 = vmatprep.subr.bf16.mxu0 %v742
    %1013 = vmatpush1.bf16.msra.mxu0 %v741
    %1014 = vmatprep.subr.bf16.mxu0 %v735
    %1015 = vmatpush1.bf16.msra.mxu0 %v734
    %1016 = vmatprep.subr.bf16.mxu0 %v728
    %1017 = vmatpush1.bf16.msra.mxu0 %v727
    %1018 = vmatprep.subr.bf16.mxu0 %v721
    %1019 = vmatpush1.bf16.msra.mxu0 %v720
    %1020 = vmatprep.subr.bf16.mxu0 %v714
    %1021 = vmatpush1.bf16.msra.mxu0 %v713
    %1022 = vmatprep.subr.bf16.mxu0 %v707
    %1023 = vmatpush1.bf16.msra.mxu0 %v706
    %1024 = vmatprep.subr.bf16.mxu0 %v812
    %1025 = vmatpush2.bf16.msra.mxu0 %v811
    %1026 = vmatprep.subr.bf16.mxu0 %v805
    %1027 = vmatpush2.bf16.msra.mxu0 %v804
    %1028 = vmatprep.subr.bf16.mxu0 %v798
    %1029 = vmatpush2.bf16.msra.mxu0 %v797
    %1030 = vmatprep.subr.bf16.mxu0 %v791
    %1031 = vmatpush2.bf16.msra.mxu0 %v790
    %1032 = vmatprep.subr.bf16.mxu0 %v784
    %1033 = vmatpush2.bf16.msra.mxu0 %v783
    %1034 = vmatprep.subr.bf16.mxu0 %v777
    %1035 = vmatpush2.bf16.msra.mxu0 %v776
    %1036 = vmatprep.subr.bf16.mxu0 %v770
    %1037 = vmatpush2.bf16.msra.mxu0 %v769
    %1038 = vmatprep.subr.bf16.mxu0 %v763
    %1039 = vmatpush2.bf16.msra.mxu0 %v762
    %1040 = vmatprep.mubr.bf16.mxu0 %v184
    %1041 = vmatmul.mubr.bf16.gmra.mxu0 %v183
    %v1042 = vpop.f32.mrf.mxu0
    %v1043 = vadd.f32 %v334, %v1042
    %v1044 = vpop.f32.mrf.mxu0
    %v1045 = vadd.f32 %v338, %v1044
    %v1046 = vpop.f32.mrf.mxu0
    %v1047 = vpop.f32.mrf.mxu0
    %1048 = vdwg.mxu0
    %1049 = vmatprep.subr.bf16.mxu0 0
    %1050 = vmatpush1.bf16.msra.mxu0 %v757
    %1051 = vmatprep.subr.bf16.mxu0 0
    %1052 = vmatpush1.bf16.msra.mxu0 %v750
    %1053 = vmatprep.subr.bf16.mxu0 0
    %1054 = vmatpush1.bf16.msra.mxu0 %v743
    %1055 = vmatprep.subr.bf16.mxu0 0
    %1056 = vmatpush1.bf16.msra.mxu0 %v736
    %1057 = vmatprep.subr.bf16.mxu0 0
    %1058 = vmatpush1.bf16.msra.mxu0 %v729
    %1059 = vmatprep.subr.bf16.mxu0 0
    %1060 = vmatpush1.bf16.msra.mxu0 %v722
    %1061 = vmatprep.subr.bf16.mxu0 0
    %1062 = vmatpush1.bf16.msra.mxu0 %v715
    %1063 = vmatprep.subr.bf16.mxu0 0
    %1064 = vmatpush1.bf16.msra.mxu0 %v708
    %1065 = vmatprep.subr.bf16.mxu0 0
    %1066 = vmatpush2.bf16.msra.mxu0 %v813
    %1067 = vmatprep.subr.bf16.mxu0 0
    %1068 = vmatpush2.bf16.msra.mxu0 %v806
    %1069 = vmatprep.subr.bf16.mxu0 0
    %1070 = vmatpush2.bf16.msra.mxu0 %v799
    %1071 = vmatprep.subr.bf16.mxu0 0
    %1072 = vmatpush2.bf16.msra.mxu0 %v792
    %1073 = vmatprep.subr.bf16.mxu0 0
    %1074 = vmatpush2.bf16.msra.mxu0 %v785
    %1075 = vmatprep.subr.bf16.mxu0 0
    %1076 = vmatpush2.bf16.msra.mxu0 %v778
    %1077 = vmatprep.subr.bf16.mxu0 0
    %1078 = vmatpush2.bf16.msra.mxu0 %v771
    %1079 = vmatprep.subr.bf16.mxu0 0
    %1080 = vmatpush2.bf16.msra.mxu0 %v764
    %1081 = vmatprep.mubr.bf16.mxu0 %v184
    %1082 = vmatmul.mubr.bf16.gmra.mxu0 %v183
    %v1083 = vpop.f32.mrf.mxu0
    %v1084 = vadd.f32 %v342, %v1083
    %v1085 = vpop.f32.mrf.mxu0
    %v1086 = vpop.f32.mrf.mxu0
    %v1087 = vpop.f32.mrf.mxu0
    %1088 = vdwg.mxu0
    %v1089 = vtanh.pop %v961
    %v1090 = vtanh.pop %v963
    %v1091 = vtanh.pop %v1002
    %v1092 = vtanh.pop %v1004
    %v1093 = vtanh.pop %v1043
    %v1094 = vtanh.pop %v1045
    %v1095 = vtanh.pop %v1084
    %1096 = vst [vmem:[#allocation10] sm:$0xff] %v1089
    %1097 = vst [vmem:[#allocation10 + $0x8] sm:$0xff] %v1090
    %1098 = vst [vmem:[#allocation10 + $0x10] sm:$0xff] %v1091
    %1099 = vst [vmem:[#allocation10 + $0x18] sm:$0xff] %v1092
    %1100 = vst [vmem:[#allocation10 + $0x20] sm:$0xff] %v1093
    %1101 = vst [vmem:[#allocation10 + $0x28] sm:$0xff] %v1094
    %1102 = vst [vmem:[#allocation10 + $0x30] sm:$0xff] %v1095
    // Predicated region
    $region38: #{tpu_custom_call.1} parent=1 // pred_check
      _
    $region39: #{tpu_custom_call.1} parent=1 // pred_check_branch
      %1104 = sbr.rel (0) target = $region41
    $region40: #{tpu_custom_call.1} parent=1 // pred_region
      %s1106 = ssub.s32 896, 896
      %1107 = vsyncadd [#allocation4], %s1106
      %s1109 = sshll.u32 [#allocation10], 4
      %s1110 = int_to_ptr.vmem [resolvable:$true] %s1109
      %1112 = dma.vmem_to_hbm [thread:$0]  %s1110, 896, %s5, [#allocation4]
    $region41: #{tpu_custom_call.1} parent=1 // pred_fallthru
      _
    // Predicated region
    $region42: #{tpu_custom_call.1} parent=1 // pred_check
      _
    $region43: #{tpu_custom_call.1} parent=1 // pred_check_branch
      %1114 = sbr.rel (0) target = $region45
    $region44: #{tpu_custom_call.1} parent=1 // pred_region
      %1115 = dma.done [#allocation4], 896
    $region45: #{tpu_custom_call.1} parent=1 // pred_fallthru
      _
    %1116 = vsyncpa [#allocation3], 1
    %1117 = vsyncpa [#allocation6], 1
    %1118 = vsyncpa [#allocation9], 1
    %1119 = vsyncpa [#allocation4], 1

</llo_original>
